<compile_context>
chip_gen: v6e
topology: v6e:2x2x1
jax: 0.10.0
libtpu: 0.0.40
codegen_flags: <defaults>
</compile_context>

<pallas_src>
import math
import jax
import jax.numpy as jnp
from jax.experimental import pallas as pl
from jax.experimental.pallas import tpu as pltpu


def _round_up(x: int, m: int) -> int:
    return (x + m - 1) // m * m


def _temporal_decay_kernel(d_ref, wt_ref, b_ref, o_ref):
    # MXU matmul (f32 accumulate) -> VPU bias add + min -> EUP exp.
    z = jnp.dot(d_ref[...], wt_ref[...], preferred_element_type=jnp.float32)
    z = z + b_ref[...]                       # broadcast (1, Hp) over rows
    # relu then negate, folded: exp(-relu(z)) == exp(min(-z, 0))
    o_ref[...] = jnp.exp(jnp.minimum(-z, 0.0))


def prepare_params(W, b, lane_multiple: int = 128):
    """One-time parameter prep: transpose W and pad the output (lane) dim.

    W : (H, D_in)  -> wt_pad : (D_in, Hp)  with Hp = round_up(H, 128)
    b : (H,)       -> b_pad  : (1, Hp)
    Pad columns are zero => gamma = relu(0) = 0 => out = 1 there; sliced off
    in the wrapper, so semantics are unchanged.
    """
    H, D_in = W.shape
    Hp = _round_up(H, lane_multiple)
    wt_pad = jnp.pad(W.T.astype(jnp.float32), ((0, 0), (0, Hp - H)))
    b_pad = jnp.pad(b.astype(jnp.float32), (0, Hp - H)).reshape(1, Hp)
    return wt_pad, b_pad


def temporal_decay(d, wt_pad, b_pad, out_features: int, *, max_tile_rows: int = 512):
    """exp(-relu(d @ W^T + b)) for d of shape (..., D_in).

    wt_pad : (D_in, Hp)   pre-transposed, lane-padded weight (from prepare_params)
    b_pad  : (1, Hp)      lane-padded bias
    out_features : true H (columns beyond it are padding and get sliced off)
    """
    *lead, D_in = d.shape
    assert D_in == wt_pad.shape[0]
    Hp = wt_pad.shape[1]

    # Flatten all leading dims (e.g. time x batch) into one row axis: one
    # pallas_call instead of one per time step.
    N = 1
    for s in lead:
        N *= s
    d2 = d.reshape(N, D_in).astype(jnp.float32)

    # Row tiling: big enough to amortize the ~0.35us/step overhead, small
    # enough for VMEM on every generation (v5e 16 MiB scoped default,
    # v7x 64 MiB physical) with double-buffered inputs.
    tile_rows = min(max_tile_rows, _round_up(N, 8))
    N_pad = _round_up(N, tile_rows)
    if N_pad != N:
        d2 = jnp.pad(d2, ((0, N_pad - N), (0, 0)))

    grid = (N_pad // tile_rows,)

    cost = pl.CostEstimate(
        flops=2 * N_pad * D_in * Hp,
        transcendentals=N_pad * Hp,
        bytes_accessed=4 * (N_pad * D_in + D_in * Hp + Hp + N_pad * Hp),
    )

    out = pl.pallas_call(
        _temporal_decay_kernel,
        out_shape=jax.ShapeDtypeStruct((N_pad, Hp), jnp.float32),
        grid_spec=pl.GridSpec(
            grid=grid,
            in_specs=[
                pl.BlockSpec((tile_rows, D_in), lambda i: (i, 0)),  # row tile of d
                pl.BlockSpec((D_in, Hp), lambda i: (0, 0)),          # weight, resident
                pl.BlockSpec((1, Hp), lambda i: (0, 0)),             # bias, resident
            ],
            out_specs=pl.BlockSpec((tile_rows, Hp), lambda i: (i, 0)),
        ),
        compiler_params=pltpu.CompilerParams(
            dimension_semantics=("parallel",),  # rows independent -> megacore/2-TC
        ),
        cost_estimate=cost,
    )(d2, wt_pad, b_pad)

    out = out[:N, :out_features]
    return out.reshape(*lead, out_features)


if __name__ == "__main__":
    # Small shapes consistent with the module: seq(T)=8, batch=8,
    # input_size=32, rnn_hid_size=32. All T time steps go through ONE call.
    T, batch, input_size, rnn_hid_size = 8, 8, 32, 32

    key = jax.random.PRNGKey(0)
    k_d, k_w, k_b = jax.random.split(key, 3)

    # Deterministic parameter init mimicking reset_parameters():
    # uniform(-stdv, stdv), stdv = 1/sqrt(rnn_hid_size)
    stdv = 1.0 / math.sqrt(rnn_hid_size)
    W = jax.random.uniform(k_w, (rnn_hid_size, input_size),
                           minval=-stdv, maxval=stdv, dtype=jnp.float32)
    b = jax.random.uniform(k_b, (rnn_hid_size,),
                           minval=-stdv, maxval=stdv, dtype=jnp.float32)

    # One-time param prep (transpose + lane padding) — NOT in the per-call path.
    wt_pad, b_pad = prepare_params(W, b)

    # Time deltas for all T steps at once (non-negative in RITS, kernel is general).
    d = jax.random.uniform(k_d, (T, batch, input_size), dtype=jnp.float32) * 5.0

    out = temporal_decay(d, wt_pad, b_pad, rnn_hid_size)
    out = jax.block_until_ready(out)

    # Reference check in plain JAX.
    ref = jnp.exp(-jnp.maximum(jnp.einsum("tbd,hd->tbh", d, W) + b, 0.0))
    assert out.shape == (T, batch, rnn_hid_size)
    assert jnp.allclose(out, ref, atol=1e-5, rtol=1e-5)

    # Also exercise the plain single-step path (B, D_in) -> (B, H).
    out1 = temporal_decay(d[0], wt_pad, b_pad, rnn_hid_size)
    out1 = jax.block_until_ready(out1)
    ref1 = jnp.exp(-jnp.maximum(d[0] @ W.T + b, 0.0))
    assert out1.shape == (batch, rnn_hid_size)
    assert jnp.allclose(out1, ref1, atol=1e-5, rtol=1e-5)

    print("KERNEL_OK")
</pallas_src>

<mosaic_0001>
module attributes {stable_mosaic.version = 11 : i64} {
  func.func @_temporal_decay_kernel(%arg0: i32, %arg1: memref<64x32xf32, #tpu.memory_space<vmem>>, %arg2: memref<32x128xf32, #tpu.memory_space<vmem>>, %arg3: memref<1x128xf32, #tpu.memory_space<vmem>>, %arg4: memref<64x128xf32, #tpu.memory_space<vmem>>) attributes {dimension_semantics = [#tpu.dimension_semantics<parallel>], iteration_bounds = array<i64: 1>, scalar_prefetch = 0 : i64, scratch_operands = 0 : i64, tpu.core_type = #tpu.core_type<tc>, window_params = [{transform_indices = @transform_0, window_bounds = array<i64: 64, 32>}, {pipeline_mode = #tpu.pipeline_mode<synchronous>, transform_indices = @transform_1, window_bounds = array<i64: 32, 128>}, {pipeline_mode = #tpu.pipeline_mode<synchronous>, transform_indices = @transform_2, window_bounds = array<i64: 1, 128>}, {transform_indices = @transform_3, window_bounds = array<i64: 64, 128>}]} {
    %c0 = arith.constant 0 : index
    %c0_0 = arith.constant 0 : index
    %0 = vector.load %arg1[%c0, %c0_0] : memref<64x32xf32, #tpu.memory_space<vmem>>, vector<64x32xf32>
    %c0_1 = arith.constant 0 : index
    %c0_2 = arith.constant 0 : index
    %1 = vector.load %arg2[%c0_1, %c0_2] : memref<32x128xf32, #tpu.memory_space<vmem>>, vector<32x128xf32>
    %cst = arith.constant dense<0.000000e+00> : vector<64x128xf32>
    %2 = tpu.matmul %0, %1, %cst {dimension_numbers = #tpu.dot_dimension_numbers<[1], [0], [0], [1], [0, 0, 1, 1], [], []>} : vector<64x32xf32>, vector<32x128xf32>, vector<64x128xf32> -> vector<64x128xf32>
    %c0_3 = arith.constant 0 : index
    %c0_4 = arith.constant 0 : index
    %3 = vector.load %arg3[%c0_3, %c0_4] : memref<1x128xf32, #tpu.memory_space<vmem>>, vector<1x128xf32>
    %4 = vector.broadcast %3 : vector<1x128xf32> to vector<64x128xf32>
    %5 = arith.addf %2, %4 : vector<64x128xf32>
    %cst_5 = arith.constant 0.000000e+00 : f32
    %6 = vector.broadcast %cst_5 : f32 to vector<64x128xf32>
    %7 = arith.subf %6, %5 : vector<64x128xf32>
    %cst_6 = arith.constant 0.000000e+00 : f32
    %8 = vector.broadcast %cst_6 : f32 to vector<64x128xf32>
    %9 = arith.minimumf %7, %8 : vector<64x128xf32>
    %10 = math.exp %9 : vector<64x128xf32>
    %c0_7 = arith.constant 0 : index
    %c0_8 = arith.constant 0 : index
    %11 = vector.load %arg4[%c0_7, %c0_8] : memref<64x128xf32, #tpu.memory_space<vmem>>, vector<64x128xf32>
    tpu.vector_store %arg4[%c0_7, %c0_8], %10 {strides = array<i32>} : memref<64x128xf32, #tpu.memory_space<vmem>>, vector<64x128xf32>,
    return
  }
  func.func @transform_0(%arg0: i32) -> (i32, i32) {
    %c0_i32 = arith.constant 0 : i32
    %c0_i32_0 = arith.constant 0 : i32
    return %arg0, %c0_i32 : i32, i32
  }
  func.func @transform_1(%arg0: i32) -> (i32, i32) {
    %c0_i32 = arith.constant 0 : i32
    %c0_i32_0 = arith.constant 0 : i32
    %c0_i32_1 = arith.constant 0 : i32
    return %c0_i32, %c0_i32_0 : i32, i32
  }
  func.func @transform_2(%arg0: i32) -> (i32, i32) {
    %c0_i32 = arith.constant 0 : i32
    %c0_i32_0 = arith.constant 0 : i32
    %c0_i32_1 = arith.constant 0 : i32
    return %c0_i32, %c0_i32_0 : i32, i32
  }
  func.func @transform_3(%arg0: i32) -> (i32, i32) {
    %c0_i32 = arith.constant 0 : i32
    %c0_i32_0 = arith.constant 0 : i32
    return %arg0, %c0_i32 : i32, i32
  }
}

</mosaic_0001>

<llo_original>
// kernel: tpu_custom_call.1
$region0: #{tpu_custom_call.1}
  #allocation0 [shape = 'u32[]', space=smem, size = 0x4, offset = 0x4, fixed_abs, tag = 'smem constant byte address 0x4 - core index']
  #allocation1 [shape = 'u32[144,128]{1,0:T(1,128)}', space=vmem, size = 0x12000, scoped, tag = 'internal scratch']
  %s0 = inlined_call_operand.vmem [shape: f32[64,32], index: 0, kind: input, shape index: {}]
  %s1 = inlined_call_operand.vmem [shape: f32[32,128], index: 1, kind: input, shape index: {}]
  %s2 = inlined_call_operand.vmem [shape: f32[1,128], index: 2, kind: input, shape index: {}]
  %s3 = inlined_call_operand.hbm [shape: f32[64,128], index: 3, kind: output, shape index: {}]
  %s4 = sld [smem:[#allocation0]]
  $region22: #{tpu_custom_call.1} parent=0
    _
  %s6 = ssub.s32 1, %s4
  %s7 = scalar_select 0, %s6, %s4
  $region1: #{tpu_custom_call.1} parent=0
    #allocation2 [shape = 'u8[32768]{0}', space=vmem, size = 0x8000, scoped, tag = 'output window, operand 0, single buffered']
    #allocation3 [shape = 's32[1]{0}', space=sflag, size = 0x4, scoped, tag = 'scoped memory for tpu_custom_call.1']
    %8 = vsyncpa [#allocation3], 0
    // Predicated region
    $region2: #{tpu_custom_call.1} parent=1 // pred_check
      _
    $region3: #{tpu_custom_call.1} parent=1 // pred_check_branch
      %10 = sbr.rel (0) target = $region5
    $region4: #{tpu_custom_call.1} parent=1 // pred_region
      _
    $region5: #{tpu_custom_call.1} parent=1 // pred_fallthru
      _
    // Predicated region
    $region6: #{tpu_custom_call.1} parent=1 // pred_check
      _
    $region7: #{tpu_custom_call.1} parent=1 // pred_check_branch
      %12 = sbr.rel (0) target = $region9
    $region8: #{tpu_custom_call.1} parent=1 // pred_region
      _
    $region9: #{tpu_custom_call.1} parent=1 // pred_fallthru
      _
    // Predicated region
    $region10: #{tpu_custom_call.1} parent=1 // pred_check
      _
    $region11: #{tpu_custom_call.1} parent=1 // pred_check_branch
      %14 = sbr.rel (0) target = $region13
    $region12: #{tpu_custom_call.1} parent=1 // pred_region
      _
    $region13: #{tpu_custom_call.1} parent=1 // pred_fallthru
      _
    %v15 = vld [vmem:[%s0] sm:$0xff]
    %v16 = vld [vmem:[%s0 + $0x8] sm:$0xff]
    %v17 = vld [vmem:[%s0 + $0x10] sm:$0xff]
    %v18 = vld [vmem:[%s0 + $0x18] sm:$0xff]
    %v19 = vld [vmem:[%s0 + $0x20] sm:$0xff]
    %v20 = vld [vmem:[%s0 + $0x28] sm:$0xff]
    %v21 = vld [vmem:[%s0 + $0x30] sm:$0xff]
    %v22 = vld [vmem:[%s0 + $0x38] sm:$0xff]
    %v23 = vld [vmem:[%s1] sm:$0xff]
    %v24 = vld [vmem:[%s1 + $0x8] sm:$0xff]
    %v25 = vld [vmem:[%s1 + $0x10] sm:$0xff]
    %v26 = vld [vmem:[%s1 + $0x18] sm:$0xff]
    %v27 = vld [vmem:[%s2] sm:$0x1]
    %v29 = vlaneseq
    %v30 = vshrl.u32 %v29, 7
    %v31 = vsub.s32 0, %v30
    %v32 = vrot.slane %v27, %v31
    %vm34 = vcmask 261120
    %v36 = vsel %vm34, %v15, 0
    %v39 = vsel %vm34, %v16, 0
    %v42 = vsel %vm34, %v17, 0
    %v45 = vsel %vm34, %v18, 0
    %v48 = vsel %vm34, %v19, 0
    %v51 = vsel %vm34, %v20, 0
    %v54 = vsel %vm34, %v21, 0
    %v57 = vsel %vm34, %v22, 0
    %59 = vmatprep.subr.mxu0 0.0
    %60 = vmatpush1.msra.mxu0 0.0
    %61 = vmatprep.subr.mxu0 0.0
    %62 = vmatpush1.msra.mxu0 0.0
    %63 = vmatprep.subr.mxu0 0.0
    %64 = vmatpush1.msra.mxu0 0.0
    %65 = vmatprep.subr.mxu0 0.0
    %66 = vmatpush1.msra.mxu0 0.0
    %67 = vmatprep.subr.mxu0 0.0
    %68 = vmatpush1.msra.mxu0 0.0
    %69 = vmatprep.subr.mxu0 0.0
    %70 = vmatpush1.msra.mxu0 0.0
    %71 = vmatprep.subr.mxu0 0.0
    %72 = vmatpush1.msra.mxu0 0.0
    %73 = vmatprep.subr.mxu0 0.0
    %74 = vmatpush1.msra.mxu0 0.0
    %75 = vmatprep.subr.mxu0 0.0
    %76 = vmatpush1.msra.mxu0 0.0
    %77 = vmatprep.subr.mxu0 0.0
    %78 = vmatpush1.msra.mxu0 0.0
    %79 = vmatprep.subr.mxu0 0.0
    %80 = vmatpush1.msra.mxu0 0.0
    %81 = vmatprep.subr.mxu0 0.0
    %82 = vmatpush1.msra.mxu0 0.0
    %83 = vmatprep.subr.mxu0 0.0
    %84 = vmatpush1.msra.mxu0 %v26
    %85 = vmatprep.subr.mxu0 0.0
    %86 = vmatpush1.msra.mxu0 %v25
    %87 = vmatprep.subr.mxu0 0.0
    %88 = vmatpush1.msra.mxu0 %v24
    %89 = vmatprep.subr.mxu0 0.0
    %90 = vmatpush1.msra.mxu0 %v23
    %91 = vmatprep.subr.mxu0 0.0
    %92 = vmatpush2.msra.mxu0 0.0
    %93 = vmatprep.subr.mxu0 0.0
    %94 = vmatpush2.msra.mxu0 0.0
    %95 = vmatprep.subr.mxu0 0.0
    %96 = vmatpush2.msra.mxu0 0.0
    %97 = vmatprep.subr.mxu0 0.0
    %98 = vmatpush2.msra.mxu0 0.0
    %99 = vmatprep.subr.mxu0 0.0
    %100 = vmatpush2.msra.mxu0 0.0
    %101 = vmatprep.subr.mxu0 0.0
    %102 = vmatpush2.msra.mxu0 0.0
    %103 = vmatprep.subr.mxu0 0.0
    %104 = vmatpush2.msra.mxu0 0.0
    %105 = vmatprep.subr.mxu0 0.0
    %106 = vmatpush2.msra.mxu0 0.0
    %107 = vmatprep.subr.mxu0 0.0
    %108 = vmatpush2.msra.mxu0 0.0
    %109 = vmatprep.subr.mxu0 0.0
    %110 = vmatpush2.msra.mxu0 0.0
    %111 = vmatprep.subr.mxu0 0.0
    %112 = vmatpush2.msra.mxu0 0.0
    %113 = vmatprep.subr.mxu0 0.0
    %114 = vmatpush2.msra.mxu0 0.0
    %115 = vmatprep.subr.mxu0 0.0
    %116 = vmatpush2.msra.mxu0 0.0
    %117 = vmatprep.subr.mxu0 0.0
    %118 = vmatpush2.msra.mxu0 0.0
    %119 = vmatprep.subr.mxu0 0.0
    %120 = vmatpush2.msra.mxu0 0.0
    %121 = vmatprep.subr.mxu0 0.0
    %122 = vmatpush2.msra.mxu0 0.0
    %123 = vmatprep.mubr.f32.mxu0 0.0
    %124 = vmatmul.mubr.f32.gmra.mxu0 %v36
    %v125 = vpop.f32.mrf.mxu0
    %v126 = vadd.f32 %v32, %v125
    %v127 = vpop.f32.mrf.mxu0
    %128 = vmatprep.mubr.f32.mxu0 0.0
    %129 = vmatmul.mubr.f32.gmra.mxu0 %v39
    %v130 = vpop.f32.mrf.mxu0
    %v131 = vadd.f32 %v32, %v130
    %v132 = vpop.f32.mrf.mxu0
    %133 = vmatprep.mubr.f32.mxu0 0.0
    %134 = vmatmul.mubr.f32.gmra.mxu0 %v42
    %v135 = vpop.f32.mrf.mxu0
    %v136 = vadd.f32 %v32, %v135
    %v137 = vpop.f32.mrf.mxu0
    %138 = vmatprep.mubr.f32.mxu0 0.0
    %139 = vmatmul.mubr.f32.gmra.mxu0 %v45
    %v140 = vpop.f32.mrf.mxu0
    %v141 = vadd.f32 %v32, %v140
    %v142 = vpop.f32.mrf.mxu0
    %143 = vmatprep.mubr.f32.mxu0 0.0
    %144 = vmatmul.mubr.f32.gmra.mxu0 %v48
    %v145 = vpop.f32.mrf.mxu0
    %v146 = vadd.f32 %v32, %v145
    %v147 = vpop.f32.mrf.mxu0
    %148 = vmatprep.mubr.f32.mxu0 0.0
    %149 = vmatmul.mubr.f32.gmra.mxu0 %v51
    %v150 = vpop.f32.mrf.mxu0
    %v151 = vadd.f32 %v32, %v150
    %v152 = vpop.f32.mrf.mxu0
    %153 = vmatprep.mubr.f32.mxu0 0.0
    %154 = vmatmul.mubr.f32.gmra.mxu0 %v54
    %v155 = vpop.f32.mrf.mxu0
    %v156 = vadd.f32 %v32, %v155
    %v157 = vpop.f32.mrf.mxu0
    %158 = vmatprep.mubr.f32.mxu0 0.0
    %159 = vmatmul.mubr.f32.gmra.mxu0 %v57
    %v160 = vpop.f32.mrf.mxu0
    %v161 = vadd.f32 %v32, %v160
    %v162 = vpop.f32.mrf.mxu0
    %163 = vdwg.mxu0
    %v164 = vsub.f32 0.0, %v126
    %v165 = vsub.f32 0.0, %v131
    %v166 = vsub.f32 0.0, %v136
    %v167 = vsub.f32 0.0, %v141
    %v168 = vsub.f32 0.0, %v146
    %v169 = vsub.f32 0.0, %v151
    %v170 = vsub.f32 0.0, %v156
    %v171 = vsub.f32 0.0, %v161
    %v172 = vmin.f32 %v164, 0.0
    %v173 = vmin.f32 %v165, 0.0
    %v174 = vmin.f32 %v166, 0.0
    %v175 = vmin.f32 %v167, 0.0
    %v176 = vmin.f32 %v168, 0.0
    %v177 = vmin.f32 %v169, 0.0
    %v178 = vmin.f32 %v170, 0.0
    %v179 = vmin.f32 %v171, 0.0
    %v180 = vmul.f32 %v172, 1.442695
    %v181 = vpow.pop %v180
    %v182 = vmul.f32 %v173, 1.442695
    %v183 = vpow.pop %v182
    %v184 = vmul.f32 %v174, 1.442695
    %v185 = vpow.pop %v184
    %v186 = vmul.f32 %v175, 1.442695
    %v187 = vpow.pop %v186
    %v188 = vmul.f32 %v176, 1.442695
    %v189 = vpow.pop %v188
    %v190 = vmul.f32 %v177, 1.442695
    %v191 = vpow.pop %v190
    %v192 = vmul.f32 %v178, 1.442695
    %v193 = vpow.pop %v192
    %v194 = vmul.f32 %v179, 1.442695
    %v195 = vpow.pop %v194
    %196 = vst [vmem:[#allocation2] sm:$0xff] %v181
    %197 = vst [vmem:[#allocation2 + $0x8] sm:$0xff] %v183
    %198 = vst [vmem:[#allocation2 + $0x10] sm:$0xff] %v185
    %199 = vst [vmem:[#allocation2 + $0x18] sm:$0xff] %v187
    %200 = vst [vmem:[#allocation2 + $0x20] sm:$0xff] %v189
    %201 = vst [vmem:[#allocation2 + $0x28] sm:$0xff] %v191
    %202 = vst [vmem:[#allocation2 + $0x30] sm:$0xff] %v193
    %203 = vst [vmem:[#allocation2 + $0x38] sm:$0xff] %v195
    // Predicated region
    $region14: #{tpu_custom_call.1} parent=1 // pred_check
      _
    $region15: #{tpu_custom_call.1} parent=1 // pred_check_branch
      %205 = sbr.rel (0) target = $region17
    $region16: #{tpu_custom_call.1} parent=1 // pred_region
      %s207 = ssub.s32 1024, 1024
      %208 = vsyncadd [#allocation3], %s207
      %s209 = sshll.u32 [#allocation2], 4
      %s210 = int_to_ptr.vmem [resolvable:$true] %s209
      %215 = dma.vmem_to_hbm [thread:$0]  %s210, 1024, %s3, [#allocation3], 128, 128, 8
    $region17: #{tpu_custom_call.1} parent=1 // pred_fallthru
      _
    // Predicated region
    $region18: #{tpu_custom_call.1} parent=1 // pred_check
      _
    $region19: #{tpu_custom_call.1} parent=1 // pred_check_branch
      %217 = sbr.rel (0) target = $region21
    $region20: #{tpu_custom_call.1} parent=1 // pred_region
      %218 = dma.done [#allocation3], 1024
    $region21: #{tpu_custom_call.1} parent=1 // pred_fallthru
      _
    %219 = vsyncpa [#allocation3], 1

</llo_original>
